<compile_context>
chip_gen: v7x
topology: tpu7x:2x2x1
jax: 0.10.0
libtpu: 0.0.40
codegen_flags: <defaults>
</compile_context>

<pallas_src>
import functools

import jax
import jax.numpy as jnp
from jax.experimental import pallas as pl
from jax.experimental.pallas import tpu as pltpu


def _conv1d_bias_relu_kernel(x_ref, w_ref, b_ref, o_ref, *, kernel_size,
                             out_len):
    # x_ref: (TB, Cin_p, L_seg)  per-sample padded input segments (compute dtype)
    # w_ref: (Cout, K * Cin_p)   tap-major weights (compute dtype)
    # b_ref: (Cout, 1)           bias (f32)
    # o_ref: (TB, Cout, L_out)   output block
    tb = x_ref.shape[0]
    w = w_ref[...]
    bias_col = b_ref[...]
    for b in range(tb):                       # static unroll, TB is small
        x = x_ref[b]                          # (Cin_p, L_seg)
        if kernel_size == 1:
            im2col = x
        else:
            views = [x]
            for k in range(1, kernel_size):
                # Left-rotation by k lanes: view[:, i] = x[:, i + k].  The
                # wrapped tail only affects columns >= L_seg - (K-1) >= L_out,
                # which are sliced off before the store.
                views.append(jnp.concatenate([x[:, k:], x[:, :k]], axis=1))
            im2col = jnp.concatenate(views, axis=0)      # (K*Cin_p, L_seg)
        # Single deep MXU matmul, f32 accumulation.
        acc = jnp.dot(w, im2col, preferred_element_type=jnp.float32)
        acc = acc + bias_col                             # broadcast (Cout, 1)
        acc = jnp.maximum(acc, 0.0)
        o_ref[b] = acc[:, :out_len].astype(o_ref.dtype)


def _round_up(x, m):
    return (x + m - 1) // m * m


def _pick_batch_tile(batch, per_sample_bytes, *, target_bytes=1 << 20,
                     max_unroll=8):
    """Largest divisor of `batch` that keeps >=2 grid steps, ~1 MiB per step
    and a bounded in-kernel unroll."""
    if batch <= 1:
        return 1
    by_traffic = max(1, target_bytes // max(per_sample_bytes, 1))
    limit = max(1, min(batch // 2, max_unroll, by_traffic))
    tb = 1
    for d in range(1, int(limit) + 1):
        if batch % d == 0:
            tb = d
    return tb


def conv_layer_forward(x, weight, bias=None, *, stride=1, padding=1,
                       compute_dtype=jnp.bfloat16, out_dtype=None):
    """ReLU(Conv1d(x) + bias); x is (B, Cin, L), weight is (Cout, Cin, K)."""
    # TODO(synk): stride != 1 and the non-default conv_layer options
    # (dropout, batch_norm, gating) are not implemented in this kernel.
    assert stride == 1, "only stride=1 (module default) is supported"
    B, Cin, L = x.shape
    Cout, Cin_w, K = weight.shape
    assert Cin_w == Cin
    L_out = L + 2 * padding - K + 1
    assert L_out > 0
    out_dtype = x.dtype if out_dtype is None else out_dtype

    # Contraction pieces must stack on native sublane tiles (16 for bf16).
    cin_mult = 16 if compute_dtype == jnp.bfloat16 else 8
    Cin_p = _round_up(Cin, cin_mult)
    KC = K * Cin_p

    # Per-sample segment: conv zero padding + right pad to a lane-dense
    # multiple of 128.  L_seg >= L + 2*padding, so (a) every valid output
    # position's receptive field lies inside its own segment and (b) the last
    # K-1 columns of the segment are junk positions (rotation wrap is safe).
    L_seg = _round_up(max(L + 2 * padding, 128), 128)

    cbytes = jnp.dtype(compute_dtype).itemsize
    obytes = jnp.dtype(out_dtype).itemsize
    per_sample = Cin_p * L_seg * cbytes + Cout * L_out * obytes
    TB = _pick_batch_tile(B, per_sample)
    n_steps = B // TB
    # TODO(synk): no length tiling -- for extremely long sequences (per-sample
    # block >> VMEM budget) a halo-carrying length grid axis would be needed.

    # Single wrapper-side pad (conv padding + alignment); no gather, no
    # transpose, no halo duplication of the input.
    x_pad = jnp.pad(x.astype(compute_dtype),
                    ((0, 0), (0, Cin_p - Cin),
                     (padding, L_seg - L - padding)))

    # Weights: (Cout, Cin, K) -> tap-major 2-D (Cout, K*Cin_p).
    w_t = jnp.transpose(weight, (0, 2, 1))                # (Cout, K, Cin)
    w_t = jnp.pad(w_t, ((0, 0), (0, 0), (0, Cin_p - Cin)))
    w2d = w_t.reshape(Cout, KC).astype(compute_dtype)

    if bias is None:
        bias = jnp.zeros((Cout,), jnp.float32)
    b_col = bias.reshape(Cout, 1).astype(jnp.float32)

    kernel = functools.partial(_conv1d_bias_relu_kernel,
                               kernel_size=K, out_len=L_out)

    # TODO(synk): for very wide convs (huge Cout*K*Cin) add a Cout grid axis
    # and single-buffer the resident weight (pl.Buffered(1)) to respect v7x's
    # 64 MiB VMEM; unnecessary for this module's channel counts.
    return pl.pallas_call(
        kernel,
        out_shape=jax.ShapeDtypeStruct((B, Cout, L_out), out_dtype),
        grid=(n_steps,),
        in_specs=[
            pl.BlockSpec((TB, Cin_p, L_seg), lambda i: (i, 0, 0)),
            pl.BlockSpec((Cout, KC), lambda i: (0, 0)),
            pl.BlockSpec((Cout, 1), lambda i: (0, 0)),
        ],
        out_specs=pl.BlockSpec((TB, Cout, L_out), lambda i: (i, 0, 0)),
        compiler_params=pltpu.CompilerParams(
            dimension_semantics=("parallel",),
            vmem_limit_bytes=32 * 1024 * 1024),
    )(x_pad, w2d, b_col)


def _reference_forward(x, weight, bias, *, padding=1,
                       compute_dtype=jnp.bfloat16):
    # Pure-JAX reference: Conv1d (NCL) + bias + ReLU, inputs rounded to the
    # kernel's MXU compute dtype so tolerances stay tight.
    xc = x.astype(compute_dtype).astype(jnp.float32)
    wc = weight.astype(compute_dtype).astype(jnp.float32)
    out = jax.lax.conv_general_dilated(
        xc, wc,
        window_strides=(1,),
        padding=[(padding, padding)],
        dimension_numbers=("NCH", "OIH", "NCH"))
    out = out + bias[None, :, None]
    return jnp.maximum(out, 0.0)


if __name__ == "__main__":
    key = jax.random.PRNGKey(0)

    def init(kw, kb, Cout, Cin, K):
        # Deterministic init mimicking PyTorch's default Conv1d init.
        fan_in = Cin * K
        bound = 1.0 / (fan_in ** 0.5)
        w = jax.random.uniform(kw, (Cout, Cin, K), jnp.float32, -bound, bound)
        b = jax.random.uniform(kb, (Cout,), jnp.float32, -bound, bound)
        return w, b

    keys = jax.random.split(key, 9)
    K = 3

    # Case 1: small shapes matching the module (Conv1d(4, 8, k=3, pad=1)).
    B1, Cin1, Cout1, L1 = 2, 4, 8, 16
    w1, b1 = init(keys[1], keys[2], Cout1, Cin1, K)
    x1 = jax.random.normal(keys[0], (B1, Cin1, L1), jnp.float32)
    out1 = jax.block_until_ready(conv_layer_forward(x1, w1, b1, padding=1))
    ref1 = _reference_forward(x1, w1, b1, padding=1)
    assert out1.shape == (B1, Cout1, L1)
    assert jnp.allclose(out1, ref1, atol=1e-2, rtol=1e-2), "case 1 mismatch"

    # Case 2: longer sequence, Cout not a multiple of 8, channel padding.
    B2, Cin2, Cout2, L2 = 2, 16, 20, 700
    w2, b2 = init(keys[4], keys[5], Cout2, Cin2, K)
    x2 = jax.random.normal(keys[3], (B2, Cin2, L2), jnp.float32)
    out2 = jax.block_until_ready(conv_layer_forward(x2, w2, b2, padding=1))
    ref2 = _reference_forward(x2, w2, b2, padding=1)
    assert out2.shape == (B2, Cout2, L2)
    assert jnp.allclose(out2, ref2, atol=1e-2, rtol=1e-2), "case 2 mismatch"

    # Case 3: exercises the multi-sample batch tile (TB > 1) and bf16 output.
    B3, Cin3, Cout3, L3 = 4, 16, 24, 300
    w3, b3 = init(keys[7], keys[8], Cout3, Cin3, K)
    x3 = jax.random.normal(keys[6], (B3, Cin3, L3), jnp.float32)
    out3 = jax.block_until_ready(
        conv_layer_forward(x3, w3, b3, padding=1, out_dtype=jnp.bfloat16))
    ref3 = _reference_forward(x3, w3, b3, padding=1)
    assert out3.shape == (B3, Cout3, L3)
    assert jnp.allclose(out3.astype(jnp.float32), ref3,
                        atol=3e-2, rtol=3e-2), "case 3 mismatch"

    print("KERNEL_OK")
</pallas_src>

<mosaic_0001>
module attributes {stable_mosaic.version = 11 : i64} {
  func.func @_conv1d_bias_relu_kernel(%arg0: i32, %arg1: memref<1x16x128xbf16, #tpu.memory_space<vmem>>, %arg2: memref<8x48xbf16, #tpu.memory_space<vmem>>, %arg3: memref<8x1xf32, #tpu.memory_space<vmem>>, %arg4: memref<1x8x16xf32, #tpu.memory_space<vmem>>) attributes {dimension_semantics = [#tpu.dimension_semantics<parallel>], iteration_bounds = array<i64: 2>, scalar_prefetch = 0 : i64, scratch_operands = 0 : i64, tpu.core_type = #tpu.core_type<tc>, window_params = [{transform_indices = @transform_0, window_bounds = array<i64: 1, 16, 128>}, {pipeline_mode = #tpu.pipeline_mode<synchronous>, transform_indices = @transform_1, window_bounds = array<i64: 8, 48>}, {pipeline_mode = #tpu.pipeline_mode<synchronous>, transform_indices = @transform_2, window_bounds = array<i64: 8, 1>}, {transform_indices = @transform_3, window_bounds = array<i64: 1, 8, 16>}]} {
    %c0 = arith.constant 0 : index
    %c0_0 = arith.constant 0 : index
    %0 = vector.load %arg2[%c0, %c0_0] : memref<8x48xbf16, #tpu.memory_space<vmem>>, vector<8x48xbf16>
    %c0_1 = arith.constant 0 : index
    %c0_2 = arith.constant 0 : index
    %1 = vector.load %arg3[%c0_1, %c0_2] : memref<8x1xf32, #tpu.memory_space<vmem>>, vector<8x1xf32>
    %c0_3 = arith.constant 0 : index
    %c0_4 = arith.constant 0 : index
    %c0_5 = arith.constant 0 : index
    %2 = vector.load %arg1[%c0_3, %c0_4, %c0_5] : memref<1x16x128xbf16, #tpu.memory_space<vmem>>, vector<1x16x128xbf16>
    %3 = vector.shape_cast %2 : vector<1x16x128xbf16> to vector<16x128xbf16>
    %4 = vector.extract_strided_slice %3 {offsets = [0, 1], sizes = [16, 127], strides = [1, 1]} : vector<16x128xbf16> to vector<16x127xbf16>
    %5 = vector.extract_strided_slice %3 {offsets = [0, 0], sizes = [16, 1], strides = [1, 1]} : vector<16x128xbf16> to vector<16x1xbf16>
    %6 = tpu.concatenate %4, %5 in 1 : vector<16x127xbf16>, vector<16x1xbf16> -> vector<16x128xbf16>
    %7 = vector.extract_strided_slice %3 {offsets = [0, 2], sizes = [16, 126], strides = [1, 1]} : vector<16x128xbf16> to vector<16x126xbf16>
    %8 = vector.extract_strided_slice %3 {offsets = [0, 0], sizes = [16, 2], strides = [1, 1]} : vector<16x128xbf16> to vector<16x2xbf16>
    %9 = tpu.concatenate %7, %8 in 1 : vector<16x126xbf16>, vector<16x2xbf16> -> vector<16x128xbf16>
    %10 = tpu.concatenate %3, %6, %9 in 0 : vector<16x128xbf16>, vector<16x128xbf16>, vector<16x128xbf16> -> vector<48x128xbf16>
    %cst = arith.constant dense<0.000000e+00> : vector<8x128xf32>
    %11 = tpu.matmul %0, %10, %cst {dimension_numbers = #tpu.dot_dimension_numbers<[1], [0], [0], [1], [0, 0, 1, 1], [], []>} : vector<8x48xbf16>, vector<48x128xbf16>, vector<8x128xf32> -> vector<8x128xf32>
    %12 = vector.broadcast %1 : vector<8x1xf32> to vector<8x128xf32>
    %13 = arith.addf %11, %12 : vector<8x128xf32>
    %cst_6 = arith.constant 0.000000e+00 : f32
    %14 = vector.broadcast %cst_6 : f32 to vector<8x128xf32>
    %15 = arith.maximumf %13, %14 : vector<8x128xf32>
    %16 = vector.extract_strided_slice %15 {offsets = [0, 0], sizes = [8, 16], strides = [1, 1]} : vector<8x128xf32> to vector<8x16xf32>
    %c0_7 = arith.constant 0 : index
    %c0_8 = arith.constant 0 : index
    %c0_9 = arith.constant 0 : index
    %17 = vector.load %arg4[%c0_7, %c0_8, %c0_9] : memref<1x8x16xf32, #tpu.memory_space<vmem>>, vector<1x8x16xf32>
    %18 = vector.shape_cast %17 : vector<1x8x16xf32> to vector<8x16xf32>
    %19 = vector.shape_cast %16 : vector<8x16xf32> to vector<1x8x16xf32>
    tpu.vector_store %arg4[%c0_7, %c0_8, %c0_9], %19 {strides = array<i32>} : memref<1x8x16xf32, #tpu.memory_space<vmem>>, vector<1x8x16xf32>,
    return
  }
  func.func @transform_0(%arg0: i32) -> (i32, i32, i32) {
    %c0_i32 = arith.constant 0 : i32
    %c0_i32_0 = arith.constant 0 : i32
    %c0_i32_1 = arith.constant 0 : i32
    return %arg0, %c0_i32, %c0_i32_0 : i32, i32, i32
  }
  func.func @transform_1(%arg0: i32) -> (i32, i32) {
    %c0_i32 = arith.constant 0 : i32
    %c0_i32_0 = arith.constant 0 : i32
    %c0_i32_1 = arith.constant 0 : i32
    return %c0_i32, %c0_i32_0 : i32, i32
  }
  func.func @transform_2(%arg0: i32) -> (i32, i32) {
    %c0_i32 = arith.constant 0 : i32
    %c0_i32_0 = arith.constant 0 : i32
    %c0_i32_1 = arith.constant 0 : i32
    return %c0_i32, %c0_i32_0 : i32, i32
  }
  func.func @transform_3(%arg0: i32) -> (i32, i32, i32) {
    %c0_i32 = arith.constant 0 : i32
    %c0_i32_0 = arith.constant 0 : i32
    %c0_i32_1 = arith.constant 0 : i32
    return %arg0, %c0_i32, %c0_i32_0 : i32, i32, i32
  }
}

</mosaic_0001>

<llo_original>
// kernel: tpu_custom_call.1
$region0: #{tpu_custom_call.1}
  #allocation0 [shape = 'u32[]', space=smem, size = 0x4, offset = 0x4, fixed_abs, tag = 'smem constant byte address 0x4 - core index']
  #allocation1 [shape = 'u32[144,128]{1,0:T(1,128)}', space=vmem, size = 0x12000, scoped, tag = 'internal scratch']
  %s0 = inlined_call_operand.hbm [shape: bf16[2,16,128], index: 0, kind: input, shape index: {}]
  %s1 = inlined_call_operand.vmem [shape: bf16[8,48], index: 1, kind: input, shape index: {}]
  %s2 = inlined_call_operand.vmem [shape: f32[8,1], index: 2, kind: input, shape index: {}]
  %s3 = inlined_call_operand.hbm [shape: f32[2,8,16], index: 3, kind: output, shape index: {}]
  %s4 = sld [smem:[#allocation0]]
  $region49: #{tpu_custom_call.1} parent=0
    _
  %s6 = ssub.s32 1, %s4
  %s7 = scalar_select 0, %s6, %s4
  $region1: #{tpu_custom_call.1} parent=0
    #allocation2 [shape = 'u8[8192]{0}', space=vmem, size = 0x2000, scoped, tag = 'input window, operand 0']
    #allocation3 [shape = 's32[2]{0}', space=sflag, size = 0x8, scoped, tag = 'scoped memory for tpu_custom_call.1']
    #allocation4 [shape = 's32[2]{0}', space=sflag, size = 0x8, scoped, tag = 'scoped memory for tpu_custom_call.1']
    #allocation5 [shape = 'u8[8192]{0}', space=vmem, size = 0x2000, scoped, tag = 'output window, operand 0']
    %8 = vsyncpa [#allocation3], 0
    %s9 = scalar_lea.sflag [#allocation3], 1
    %10 = vsyncpa %s9, 0
    %11 = vsyncpa [#allocation4], 0
    %s12 = scalar_lea.sflag [#allocation4], 1
    %13 = vsyncpa %s12, 0
    loop: start=0, step=1, limit=4
    $region2: #{tpu_custom_call.1} parent=1 // loop_pre_header
      _
    $region3: #{tpu_custom_call.1} parent=1 // loop_header
      %s15 = sphi 0, %s19
      %p16 = scmp.ge.s32.totalorder %s15, 4
      %s25 = sphi 0, %s27
      %s28 = sphi 0, %s25
      %s29 = sphi 0, %s28
      %s45 = sphi 0, %s29
      %s49 = sphi 0, %s49
      %s51 = sphi 0, %s49
      %s52 = sphi 0, %s51
      %s66 = sphi 0, %s52
      %s70 = sphi 0, %s70
      %s72 = sphi 0, %s70
      %s73 = sphi 0, %s72
      %s87 = sphi 0, %s73
      %s93 = sphi 0, %s95
      %s96 = sphi 0, %s93
      %s97 = sphi 0, %s96
      %s113 = sphi 0, %s97
    $region4: #{tpu_custom_call.1} parent=1 // loop_header_branch
      %18 = sbr.rel (%p16) target = $region8
    $region5: #{tpu_custom_call.1} parent=1 // loop_body
      %s20 = ssub.s32 %s15, 1
      %s21 = ssub.s32 %s15, 2
      %s22 = sadd.s32 %s15, 1
      %s23 = ssub.s32 %s15, %s22
      %p24 = scmp.eq.s32.totalorder %s23, 0
      %s26 = sadd.s32 %s25, 1
      %s27 = scalar_select %p24, %s25, %s26
      %p30 = pneg %p24
      %p31 = scmp.eq.s32.totalorder %s15, 1
      %p32 = por %p30, %p31
      %p33 = scmp.ne.s32.totalorder %s25, %s28
      %p34 = scmp.eq.s32.totalorder %s15, 0
      %p35 = por %p33, %p34
      %p36 = scmp.ne.s32.totalorder %s25, %s28
      %p37 = scmp.eq.s32.totalorder %s20, 1
      %p38 = por %p36, %p37
      %p39 = scmp.ne.s32.totalorder %s28, %s29
      %p40 = scmp.eq.s32.totalorder %s20, 0
      %p41 = por %p39, %p40
      %p42 = scmp.ne.s32.totalorder %s28, %s29
      %p43 = scmp.eq.s32.totalorder %s21, 1
      %p44 = por %p42, %p43
      %p46 = scmp.ne.s32.totalorder %s29, %s45
      %p47 = scmp.eq.s32.totalorder %s21, 0
      %p48 = por %p46, %p47
      %s50 = sadd.s32 %s49, 1
      %p53 = scmp.eq.s32.totalorder %s15, 1
      %p54 = scmp.ne.s32.totalorder %s49, %s51
      %p55 = scmp.eq.s32.totalorder %s15, 0
      %p56 = por %p54, %p55
      %p57 = scmp.ne.s32.totalorder %s49, %s51
      %p58 = scmp.eq.s32.totalorder %s20, 1
      %p59 = por %p57, %p58
      %p60 = scmp.ne.s32.totalorder %s51, %s52
      %p61 = scmp.eq.s32.totalorder %s20, 0
      %p62 = por %p60, %p61
      %p63 = scmp.ne.s32.totalorder %s51, %s52
      %p64 = scmp.eq.s32.totalorder %s21, 1
      %p65 = por %p63, %p64
      %p67 = scmp.ne.s32.totalorder %s52, %s66
      %p68 = scmp.eq.s32.totalorder %s21, 0
      %p69 = por %p67, %p68
      %s71 = sadd.s32 %s70, 1
      %p74 = scmp.eq.s32.totalorder %s15, 1
      %p75 = scmp.ne.s32.totalorder %s70, %s72
      %p76 = scmp.eq.s32.totalorder %s15, 0
      %p77 = por %p75, %p76
      %p78 = scmp.ne.s32.totalorder %s70, %s72
      %p79 = scmp.eq.s32.totalorder %s20, 1
      %p80 = por %p78, %p79
      %p81 = scmp.ne.s32.totalorder %s72, %s73
      %p82 = scmp.eq.s32.totalorder %s20, 0
      %p83 = por %p81, %p82
      %p84 = scmp.ne.s32.totalorder %s72, %s73
      %p85 = scmp.eq.s32.totalorder %s21, 1
      %p86 = por %p84, %p85
      %p88 = scmp.ne.s32.totalorder %s73, %s87
      %p89 = scmp.eq.s32.totalorder %s21, 0
      %p90 = por %p88, %p89
      %s91 = ssub.s32 %s15, %s22
      %p92 = scmp.eq.s32.totalorder %s91, 0
      %s94 = sadd.s32 %s93, 1
      %s95 = scalar_select %p92, %s93, %s94
      %p98 = pneg %p92
      %p99 = scmp.eq.s32.totalorder %s15, 1
      %p100 = por %p98, %p99
      %p101 = scmp.ne.s32.totalorder %s93, %s96
      %p102 = scmp.eq.s32.totalorder %s15, 0
      %p103 = por %p101, %p102
      %p104 = scmp.ne.s32.totalorder %s93, %s96
      %p105 = scmp.eq.s32.totalorder %s20, 1
      %p106 = por %p104, %p105
      %p107 = scmp.ne.s32.totalorder %s96, %s97
      %p108 = scmp.eq.s32.totalorder %s20, 0
      %p109 = por %p107, %p108
      %p110 = scmp.ne.s32.totalorder %s96, %s97
      %p111 = scmp.eq.s32.totalorder %s21, 1
      %p112 = por %p110, %p111
      %p114 = scmp.ne.s32.totalorder %s97, %s113
      %p115 = scmp.eq.s32.totalorder %s21, 0
      %p116 = por %p114, %p115
      %p117 = scmp.le.s32.totalorder 1, %s15
      %p118 = scmp.lt.s32.totalorder %s15, 3
      %p119 = pnand %p117, %p118
      %p120 = pneg %p119
      // Predicated region
      $region9: #{tpu_custom_call.1} parent=5 // pred_check
        _
      $region10: #{tpu_custom_call.1} parent=5 // pred_check_branch
        %122 = sbr.rel (%p119) target = $region12
      $region11: #{tpu_custom_call.1} parent=5 // pred_region
        %s123 = ssub.s32 %s15, 1
        // Predicated region
        $region13: #{tpu_custom_call.1} parent=11 // pred_check
          %p124 = pneg %p62
        $region14: #{tpu_custom_call.1} parent=11 // pred_check_branch
          %126 = sbr.rel (%p124) target = $region16
        $region15: #{tpu_custom_call.1} parent=11 // pred_region
          _
        $region16: #{tpu_custom_call.1} parent=11 // pred_fallthru
          _
        // Predicated region
        $region17: #{tpu_custom_call.1} parent=11 // pred_check
          %p127 = pneg %p83
        $region18: #{tpu_custom_call.1} parent=11 // pred_check_branch
          %129 = sbr.rel (%p127) target = $region20
        $region19: #{tpu_custom_call.1} parent=11 // pred_region
          _
        $region20: #{tpu_custom_call.1} parent=11 // pred_fallthru
          _
      $region12: #{tpu_custom_call.1} parent=5 // pred_fallthru
        _
      %p130 = scmp.lt.s32.totalorder %s15, 2
      // Predicated region
      $region21: #{tpu_custom_call.1} parent=5 // pred_check
        %p131 = pneg %p130
      $region22: #{tpu_custom_call.1} parent=5 // pred_check_branch
        %133 = sbr.rel (%p131) target = $region24
      $region23: #{tpu_custom_call.1} parent=5 // pred_region
        // Predicated region
        $region25: #{tpu_custom_call.1} parent=23 // pred_check
          %p134 = pneg %p35
        $region26: #{tpu_custom_call.1} parent=23 // pred_check_branch
          %136 = sbr.rel (%p134) target = $region28
        $region27: #{tpu_custom_call.1} parent=23 // pred_region
          %s137 = sand.u32 %s25, 1
          %s138 = scalar_lea.sflag [#allocation3], %s137
          %s139 = sand.u32 %s25, 1
          %s140 = smul.addr %s139, 8
          %s141 = scalar_lea.vmem [#allocation2], %s140
          %s143 = ssub.s32 128, 128
          %144 = vsyncadd %s138, %s143
          %s145 = smul.addr %s15, 2
          %s146 = smul.addr %s145, 64
          %s147 = scalar_lea.hbm %s0, %s146
          %s148 = sshll.u32 %s141, 4
          %s149 = int_to_ptr.vmem [resolvable:$true] %s148
          %154 = dma.hbm_to_vmem [thread:$0]  %s147, 128, %s149, %s138, 64, 64, 4
        $region28: #{tpu_custom_call.1} parent=23 // pred_fallthru
          _
      $region24: #{tpu_custom_call.1} parent=5 // pred_fallthru
        _
      %p155 = scmp.le.s32.totalorder 1, %s15
      %p156 = scmp.lt.s32.totalorder %s15, 3
      %p157 = pnand %p155, %p156
      %p158 = pneg %p157
      // Predicated region
      $region29: #{tpu_custom_call.1} parent=5 // pred_check
        _
      $region30: #{tpu_custom_call.1} parent=5 // pred_check_branch
        %160 = sbr.rel (%p157) target = $region32
      $region31: #{tpu_custom_call.1} parent=5 // pred_region
        %s161 = ssub.s32 %s15, 1
        %s162 = sand.u32 %s28, 1
        %s163 = scalar_lea.sflag [#allocation3], %s162
        %s164 = sand.u32 %s28, 1
        %s165 = smul.addr %s164, 8
        %s166 = scalar_lea.vmem [#allocation2], %s165
        // Predicated region
        $region33: #{tpu_custom_call.1} parent=31 // pred_check
          %p167 = pneg %p41
        $region34: #{tpu_custom_call.1} parent=31 // pred_check_branch
          %169 = sbr.rel (%p167) target = $region36
        $region35: #{tpu_custom_call.1} parent=31 // pred_region
          %170 = dma.done %s163, 128
        $region36: #{tpu_custom_call.1} parent=31 // pred_fallthru
          _
        %s171 = sand.u32 %s28, 1
        %s172 = scalar_lea.sflag [#allocation3], %s171
        %s173 = sand.u32 %s28, 1
        %s174 = smul.addr %s173, 8
        %s175 = scalar_lea.vmem [#allocation2], %s174
        %p176 = pneg %p41
        %p177 = pneg %p38
        %p178 = pneg %p62
        %p179 = pneg %p59
        %p180 = pneg %p83
        %p181 = pneg %p80
        %p182 = pneg %p109
        %p183 = pneg %p106
        %s184 = sand.u32 %s96, 1
        %s185 = scalar_lea.sflag [#allocation4], %s184
        %s186 = sand.u32 %s96, 1
        %s187 = smul.addr %s186, 8
        %s188 = scalar_lea.vmem [#allocation5], %s187
        %v190 = vld [vmem:[%s1] sm:$0xf]
        %v191 = vld [vmem:[%s2] sm:$0xff]
        %v192 = vld [vmem:[%s166] sm:$0xf]
        %v193 = vld [vmem:[%s166 + $0x4] sm:$0xf]
        %v196 = vunpack.c.l.b16 %v192
        %v197 = vunpack.c.l.b16 %v193
        %v198 = vpack.c.b16 %v197, %v196
        %199 = vrot.lane.b32.xlu0 %v198, 127
        %v200 = vpop.permute.xlu0 %199
        %203 = vrot.lane.b32.xlu0 %v198, 126
        %v204 = vpop.permute.xlu0 %203
        %209 = vset.pattern.permute.xlu0 0
        %210 = vperm.xlu0 %209, %v191
        %v211 = vpop.permute.xlu0 %210
        %vm213 = vcmask 392192
        %v215 = vsel %vm213, %v190, 0
        %217 = vmatprep.subr.bf16.mxu0 0
        %218 = vmatpush1.bf16.msra.mxu0 %v198
        %219 = vmatprep.subr.bf16.mxu0 0
        %220 = vmatpush1.bf16.msra.mxu0 %v200
        %221 = vmatprep.subr.bf16.mxu0 0
        %222 = vmatpush1.bf16.msra.mxu0 %v204
        %223 = vmatprep.subr.bf16.mxu0 0
        %224 = vmatpush1.bf16.msra.mxu0 0
        %225 = vmatprep.subr.bf16.mxu0 0
        %226 = vmatpush1.bf16.msra.mxu0 0
        %227 = vmatprep.subr.bf16.mxu0 0
        %228 = vmatpush1.bf16.msra.mxu0 0
        %229 = vmatprep.subr.bf16.mxu0 0
        %230 = vmatpush1.bf16.msra.mxu0 0
        %231 = vmatprep.subr.bf16.mxu0 0
        %232 = vmatpush1.bf16.msra.mxu0 0
        %233 = vmatprep.subr.bf16.mxu0 0
        %234 = vmatpush1.bf16.msra.mxu0 0
        %235 = vmatprep.subr.bf16.mxu0 0
        %236 = vmatpush1.bf16.msra.mxu0 0
        %237 = vmatprep.subr.bf16.mxu0 0
        %238 = vmatpush1.bf16.msra.mxu0 0
        %239 = vmatprep.subr.bf16.mxu0 0
        %240 = vmatpush1.bf16.msra.mxu0 0
        %241 = vmatprep.subr.bf16.mxu0 0
        %242 = vmatpush1.bf16.msra.mxu0 0
        %243 = vmatprep.subr.bf16.mxu0 0
        %244 = vmatpush1.bf16.msra.mxu0 0
        %245 = vmatprep.subr.bf16.mxu0 0
        %246 = vmatpush1.bf16.msra.mxu0 0
        %247 = vmatprep.subr.bf16.mxu0 0
        %248 = vmatpush1.bf16.msra.mxu0 0
        %249 = vmatprep.mubr.bf16.mxu0 0
        %250 = vmatmul.mubr.bf16.gmra.mrb[0].mxu0 %v215
        %v251 = vpop.f32.mrb[0].mxu0
        %v252 = vadd.f32 %v211, %v251
        %v253 = vpop.f32.mrb[0].mxu0
        %v254 = vpop.f32.mrb[0].mxu0
        %v255 = vpop.f32.mrb[0].mxu0
        %256 = vdwg.mxu0
        %v257 = vmax.f32 %v252, 0.0
        %vm258 = vcmask 130048
        %259 = vst.msk [vmem:[%s188] sm:$0xff] %vm258, %v257
        %s260 = sand.u32 %s96, 1
        %s261 = scalar_lea.sflag [#allocation4], %s260
        %s262 = sand.u32 %s96, 1
        %s263 = smul.addr %s262, 8
        %s264 = scalar_lea.vmem [#allocation5], %s263
        // Predicated region
        $region37: #{tpu_custom_call.1} parent=31 // pred_check
          %p265 = pneg %p106
        $region38: #{tpu_custom_call.1} parent=31 // pred_check_branch
          %267 = sbr.rel (%p265) target = $region40
        $region39: #{tpu_custom_call.1} parent=31 // pred_region
          %s269 = ssub.s32 128, 128
          %270 = vsyncadd %s261, %s269
          %s271 = smul.addr %s20, 128
          %s272 = scalar_lea.hbm %s3, %s271
          %s274 = sshll.u32 %s264, 4
          %s275 = int_to_ptr.vmem [resolvable:$true] %s274
          %277 = dma.vmem_to_hbm [thread:$0]  %s275, 128, %s272, %s261
        $region40: #{tpu_custom_call.1} parent=31 // pred_fallthru
          _
      $region32: #{tpu_custom_call.1} parent=5 // pred_fallthru
        _
      %p278 = scmp.le.s32.totalorder 2, %s15
      // Predicated region
      $region41: #{tpu_custom_call.1} parent=5 // pred_check
        %p279 = pneg %p278
      $region42: #{tpu_custom_call.1} parent=5 // pred_check_branch
        %281 = sbr.rel (%p279) target = $region44
      $region43: #{tpu_custom_call.1} parent=5 // pred_region
        %s282 = ssub.s32 %s15, 2
        // Predicated region
        $region45: #{tpu_custom_call.1} parent=43 // pred_check
          %p283 = pneg %p112
        $region46: #{tpu_custom_call.1} parent=43 // pred_check_branch
          %285 = sbr.rel (%p283) target = $region48
        $region47: #{tpu_custom_call.1} parent=43 // pred_region
          %s286 = sand.u32 %s97, 1
          %s287 = scalar_lea.sflag [#allocation4], %s286
          %s288 = sand.u32 %s97, 1
          %s289 = smul.addr %s288, 8
          %s290 = scalar_lea.vmem [#allocation5], %s289
          %291 = dma.done %s287, 128
        $region48: #{tpu_custom_call.1} parent=43 // pred_fallthru
          _
      $region44: #{tpu_custom_call.1} parent=5 // pred_fallthru
        _
    $region6: #{tpu_custom_call.1} parent=1 // loop_footer
      %s19 = sadd.s32 1, %s15
    $region7: #{tpu_custom_call.1} parent=1 // loop_footer_branch
      %14 = sbr.rel target = $region3
    $region8: #{tpu_custom_call.1} parent=1 // loop_exit
      _
    %292 = vsyncpa [#allocation3], 1
    %s293 = scalar_lea.sflag [#allocation3], 1
    %294 = vsyncpa %s293, 1
    %295 = vsyncpa [#allocation4], 1
    %s296 = scalar_lea.sflag [#allocation4], 1
    %297 = vsyncpa %s296, 1

</llo_original>
